<compile_context>
chip_gen: v6e
topology: v6e:2x2x1
jax: 0.10.0
libtpu: 0.0.40
codegen_flags: <defaults>
</compile_context>

<pallas_src>
import jax
import jax.numpy as jnp
from jax.experimental import pallas as pl
from jax.experimental.pallas import tpu as pltpu


def _round_up(v, m):
    return (v + m - 1) // m * m


def _ae_kernel(x_ref,
               w1_ref, b1_ref,
               w2_ref, b2_ref,
               w3_ref, b3_ref,
               w4_ref, b4_ref,
               dec_ref, enc_ref):
    x = x_ref[...].astype(jnp.float32)                         # (TB, Dp)

    # ---- encoder ----
    h1 = jnp.dot(x, w1_ref[...], preferred_element_type=jnp.float32) + b1_ref[...]
    h1 = jnp.maximum(h1, 0.0)                                  # ReLU
    h2 = jnp.dot(h1, w2_ref[...], preferred_element_type=jnp.float32) + b2_ref[...]
    h2 = jnp.maximum(h2, 0.0)                                  # ReLU -> encoded

    # ---- decoder ----
    h3 = jnp.dot(h2, w3_ref[...], preferred_element_type=jnp.float32) + b3_ref[...]
    h3 = jnp.maximum(h3, 0.0)                                  # ReLU
    h4 = jnp.dot(h3, w4_ref[...], preferred_element_type=jnp.float32) + b4_ref[...]
    dec = jax.nn.sigmoid(h4)                                   # Sigmoid -> decoded

    dec_ref[...] = dec.astype(dec_ref.dtype)
    enc_ref[...] = h2.astype(enc_ref.dtype)


def autoencoder_forward(x, params, *, block_b=8192, out_dtype=None):
    """x: (B, D). params: dict of f32 weights/biases. Returns (decoded, encoded)."""
    B, D = x.shape
    out_dtype = x.dtype if out_dtype is None else jnp.dtype(out_dtype)

    w1, b1 = params["w1"], params["b1"]   # (D,16), (1,16)
    w2, b2 = params["w2"], params["b2"]   # (16,8), (1,8)
    w3, b3 = params["w3"], params["b3"]   # (8,16), (1,16)
    w4, b4 = params["w4"], params["b4"]   # (16,D), (1,D)
    E = w2.shape[1]                       # encoded width (8)

    # ---- lane-dense packing: p original rows per packed lane-row ----
    p = 128 // D if (D <= 128 and 128 % D == 0) else 1
    if p > 1 and B % p != 0:
        p = 1  # TODO(synk): could pad <=p-1 rows instead; unpacked fallback keeps it copy-free.

    if p > 1:
        eye = jnp.eye(p, dtype=jnp.float32)
        pack_w = lambda w: jnp.kron(eye, w)          # block-diagonal weights
        pack_b = lambda b: jnp.tile(b, (1, p))       # tiled biases
        w1p, w2p, w3p, w4p = (pack_w(w) for w in (w1, w2, w3, w4))
        b1p, b2p, b3p, b4p = (pack_b(b) for b in (b1, b2, b3, b4))
        xk = x.reshape(B // p, p * D)                # free, row-major contiguous
    else:
        w1p, w2p, w3p, w4p = w1, w2, w3, w4
        b1p, b2p, b3p, b4p = b1, b2, b3, b4
        xk = x

    Bp, Dp = xk.shape
    Ep = p * E

    # ---- batch tile (in packed-row units) ----
    sublane = 8 * (4 // max(1, jnp.dtype(x.dtype).itemsize))   # 8 for f32, 16 for bf16
    desired = max(block_b // p, sublane)
    if p == 1:
        desired = min(desired, 4096)     # lane-padded layout: keep VMEM modest on v7x
    tb = min(_round_up(desired, sublane), _round_up(Bp, sublane))
    tb = max(tb, sublane)
    if Bp > sublane:
        # keep >=2 grid steps so the "parallel" axis can shard across v7x's 2 TCs
        tb = min(tb, max(sublane, _round_up(pl.cdiv(Bp, 2), sublane)))
    grid = (pl.cdiv(Bp, tb),)            # ragged last block is clipped by Pallas

    # ---- VMEM budget derived from actual (lane-padded) tile bytes ----
    lane = lambda c: _round_up(c, 128)
    itemsize = jnp.dtype(out_dtype).itemsize
    io_row = lane(Dp) * jnp.dtype(x.dtype).itemsize + (lane(Dp) + lane(Ep)) * itemsize
    tmp_row = 4 * lane(max(Dp, 64)) * 4              # h1..h4 f32 temporaries
    per_step = tb * (2 * io_row + tmp_row)           # double-buffered blocks + temps
    vmem_limit = int(min(64 * 1024 * 1024, max(16 * 1024 * 1024, 2 * per_step)))

    batch_spec = lambda cols: pl.BlockSpec((tb, cols), lambda i: (i, 0))
    resident = lambda a: pl.BlockSpec(a.shape, lambda i: (0, 0))   # stays in VMEM

    dec, enc = pl.pallas_call(
        _ae_kernel,
        out_shape=(jax.ShapeDtypeStruct((Bp, Dp), out_dtype),
                   jax.ShapeDtypeStruct((Bp, Ep), out_dtype)),
        grid=grid,
        in_specs=[
            batch_spec(Dp),
            resident(w1p), resident(b1p),
            resident(w2p), resident(b2p),
            resident(w3p), resident(b3p),
            resident(w4p), resident(b4p),
        ],
        out_specs=(batch_spec(Dp), batch_spec(Ep)),
        compiler_params=pltpu.CompilerParams(
            dimension_semantics=("parallel",),        # megacore shard on v7x
            vmem_limit_bytes=vmem_limit,
        ),
    )(xk, w1p, b1p, w2p, b2p, w3p, b3p, w4p, b4p)

    return dec.reshape(B, D), enc.reshape(B, E)       # free un-packing reshapes


def init_params(key, input_dim):
    """Deterministic init mimicking PyTorch nn.Linear default U[-1/sqrt(fan_in), +]."""
    dims = [(input_dim, 16), (16, 8), (8, 16), (16, input_dim)]
    params = {}
    for i, (fan_in, fan_out) in enumerate(dims, start=1):
        key, kw, kb = jax.random.split(key, 3)
        bound = 1.0 / jnp.sqrt(jnp.float32(fan_in))
        params[f"w{i}"] = jax.random.uniform(kw, (fan_in, fan_out), jnp.float32,
                                             minval=-bound, maxval=bound)
        params[f"b{i}"] = jax.random.uniform(kb, (1, fan_out), jnp.float32,
                                             minval=-bound, maxval=bound)
    return params


def _reference_forward(x, p):
    relu = lambda v: jnp.maximum(v, 0.0)
    h1 = relu(x @ p["w1"] + p["b1"])
    h2 = relu(h1 @ p["w2"] + p["b2"])
    h3 = relu(h2 @ p["w3"] + p["b3"])
    dec = jax.nn.sigmoid(h3 @ p["w4"] + p["b4"])
    return dec, h2


if __name__ == "__main__":
    key = jax.random.PRNGKey(0)
    input_dim = 32
    k1, k2, k3, kp = jax.random.split(key, 4)
    params = init_params(kp, input_dim)

    # Case 1: tiny batch, packed (lane-dense) path, single clipped block.
    B1 = 8
    x1 = jax.random.normal(k1, (B1, input_dim), jnp.float32)
    d1, e1 = autoencoder_forward(x1, params)
    jax.block_until_ready((d1, e1))
    rd1, re1 = _reference_forward(x1, params)
    assert d1.shape == (B1, input_dim) and e1.shape == (B1, 8)
    assert jnp.allclose(d1, rd1, atol=1e-5, rtol=1e-5)
    assert jnp.allclose(e1, re1, atol=1e-5, rtol=1e-5)

    # Case 2: packed path, multi-step grid with a ragged last block
    # (B=40 -> Bp=10 packed rows, tb=8 -> 2 steps, last block clipped by Pallas).
    B2 = 40
    x2 = jax.random.normal(k2, (B2, input_dim), jnp.float32)
    d2, e2 = autoencoder_forward(x2, params)
    jax.block_until_ready((d2, e2))
    rd2, re2 = _reference_forward(x2, params)
    assert d2.shape == (B2, input_dim) and e2.shape == (B2, 8)
    assert jnp.allclose(d2, rd2, atol=1e-5, rtol=1e-5)
    assert jnp.allclose(e2, re2, atol=1e-5, rtol=1e-5)

    # Case 3: D that does not divide 128 -> unpacked fallback path, ragged grid.
    dim3 = 24
    params3 = init_params(kp, dim3)
    x3 = jax.random.normal(k3, (24, dim3), jnp.float32)
    d3, e3 = autoencoder_forward(x3, params3)
    jax.block_until_ready((d3, e3))
    rd3, re3 = _reference_forward(x3, params3)
    assert d3.shape == (24, dim3) and e3.shape == (24, 8)
    assert jnp.allclose(d3, rd3, atol=1e-5, rtol=1e-5)
    assert jnp.allclose(e3, re3, atol=1e-5, rtol=1e-5)

    # Case 4: optional bf16 I/O path (compute stays f32 inside the kernel).
    x4 = x2.astype(jnp.bfloat16)
    d4, e4 = autoencoder_forward(x4, params, out_dtype=jnp.bfloat16)
    jax.block_until_ready((d4, e4))
    rd4, re4 = _reference_forward(x4.astype(jnp.float32), params)
    assert d4.dtype == jnp.bfloat16 and e4.dtype == jnp.bfloat16
    assert jnp.allclose(d4.astype(jnp.float32), rd4, atol=5e-2, rtol=5e-2)
    assert jnp.allclose(e4.astype(jnp.float32), re4, atol=5e-2, rtol=5e-2)

    print("KERNEL_OK")
</pallas_src>

<mosaic_0001>
module attributes {stable_mosaic.version = 11 : i64} {
  func.func @_ae_kernel(%arg0: i32, %arg1: memref<8x128xf32, #tpu.memory_space<vmem>>, %arg2: memref<128x64xf32, #tpu.memory_space<vmem>>, %arg3: memref<1x64xf32, #tpu.memory_space<vmem>>, %arg4: memref<64x32xf32, #tpu.memory_space<vmem>>, %arg5: memref<1x32xf32, #tpu.memory_space<vmem>>, %arg6: memref<32x64xf32, #tpu.memory_space<vmem>>, %arg7: memref<1x64xf32, #tpu.memory_space<vmem>>, %arg8: memref<64x128xf32, #tpu.memory_space<vmem>>, %arg9: memref<1x128xf32, #tpu.memory_space<vmem>>, %arg10: memref<8x128xf32, #tpu.memory_space<vmem>>, %arg11: memref<8x32xf32, #tpu.memory_space<vmem>>) attributes {dimension_semantics = [#tpu.dimension_semantics<parallel>], iteration_bounds = array<i64: 1>, scalar_prefetch = 0 : i64, scratch_operands = 0 : i64, tpu.core_type = #tpu.core_type<tc>, window_params = [{transform_indices = @transform_0, window_bounds = array<i64: 8, 128>}, {pipeline_mode = #tpu.pipeline_mode<synchronous>, transform_indices = @transform_1, window_bounds = array<i64: 128, 64>}, {pipeline_mode = #tpu.pipeline_mode<synchronous>, transform_indices = @transform_2, window_bounds = array<i64: 1, 64>}, {pipeline_mode = #tpu.pipeline_mode<synchronous>, transform_indices = @transform_3, window_bounds = array<i64: 64, 32>}, {pipeline_mode = #tpu.pipeline_mode<synchronous>, transform_indices = @transform_4, window_bounds = array<i64: 1, 32>}, {pipeline_mode = #tpu.pipeline_mode<synchronous>, transform_indices = @transform_5, window_bounds = array<i64: 32, 64>}, {pipeline_mode = #tpu.pipeline_mode<synchronous>, transform_indices = @transform_6, window_bounds = array<i64: 1, 64>}, {pipeline_mode = #tpu.pipeline_mode<synchronous>, transform_indices = @transform_7, window_bounds = array<i64: 64, 128>}, {pipeline_mode = #tpu.pipeline_mode<synchronous>, transform_indices = @transform_8, window_bounds = array<i64: 1, 128>}, {transform_indices = @transform_9, window_bounds = array<i64: 8, 128>}, {transform_indices = @transform_10, window_bounds = array<i64: 8, 32>}]} {
    %c0 = arith.constant 0 : index
    %c0_0 = arith.constant 0 : index
    %0 = vector.load %arg1[%c0, %c0_0] : memref<8x128xf32, #tpu.memory_space<vmem>>, vector<8x128xf32>
    %c0_1 = arith.constant 0 : index
    %c0_2 = arith.constant 0 : index
    %1 = vector.load %arg2[%c0_1, %c0_2] : memref<128x64xf32, #tpu.memory_space<vmem>>, vector<128x64xf32>
    %cst = arith.constant dense<0.000000e+00> : vector<8x64xf32>
    %2 = tpu.matmul %0, %1, %cst {dimension_numbers = #tpu.dot_dimension_numbers<[1], [0], [0], [1], [0, 0, 1, 1], [], []>} : vector<8x128xf32>, vector<128x64xf32>, vector<8x64xf32> -> vector<8x64xf32>
    %c0_3 = arith.constant 0 : index
    %c0_4 = arith.constant 0 : index
    %3 = vector.load %arg3[%c0_3, %c0_4] : memref<1x64xf32, #tpu.memory_space<vmem>>, vector<1x64xf32>
    %4 = vector.broadcast %3 : vector<1x64xf32> to vector<8x64xf32>
    %5 = arith.addf %2, %4 : vector<8x64xf32>
    %cst_5 = arith.constant 0.000000e+00 : f32
    %6 = vector.broadcast %cst_5 : f32 to vector<8x64xf32>
    %7 = arith.maximumf %5, %6 : vector<8x64xf32>
    %c0_6 = arith.constant 0 : index
    %c0_7 = arith.constant 0 : index
    %8 = vector.load %arg4[%c0_6, %c0_7] : memref<64x32xf32, #tpu.memory_space<vmem>>, vector<64x32xf32>
    %cst_8 = arith.constant dense<0.000000e+00> : vector<8x32xf32>
    %9 = tpu.matmul %7, %8, %cst_8 {dimension_numbers = #tpu.dot_dimension_numbers<[1], [0], [0], [1], [0, 0, 1, 1], [], []>} : vector<8x64xf32>, vector<64x32xf32>, vector<8x32xf32> -> vector<8x32xf32>
    %c0_9 = arith.constant 0 : index
    %c0_10 = arith.constant 0 : index
    %10 = vector.load %arg5[%c0_9, %c0_10] : memref<1x32xf32, #tpu.memory_space<vmem>>, vector<1x32xf32>
    %11 = vector.broadcast %10 : vector<1x32xf32> to vector<8x32xf32>
    %12 = arith.addf %9, %11 : vector<8x32xf32>
    %cst_11 = arith.constant 0.000000e+00 : f32
    %13 = vector.broadcast %cst_11 : f32 to vector<8x32xf32>
    %14 = arith.maximumf %12, %13 : vector<8x32xf32>
    %c0_12 = arith.constant 0 : index
    %c0_13 = arith.constant 0 : index
    %15 = vector.load %arg6[%c0_12, %c0_13] : memref<32x64xf32, #tpu.memory_space<vmem>>, vector<32x64xf32>
    %cst_14 = arith.constant dense<0.000000e+00> : vector<8x64xf32>
    %16 = tpu.matmul %14, %15, %cst_14 {dimension_numbers = #tpu.dot_dimension_numbers<[1], [0], [0], [1], [0, 0, 1, 1], [], []>} : vector<8x32xf32>, vector<32x64xf32>, vector<8x64xf32> -> vector<8x64xf32>
    %c0_15 = arith.constant 0 : index
    %c0_16 = arith.constant 0 : index
    %17 = vector.load %arg7[%c0_15, %c0_16] : memref<1x64xf32, #tpu.memory_space<vmem>>, vector<1x64xf32>
    %18 = vector.broadcast %17 : vector<1x64xf32> to vector<8x64xf32>
    %19 = arith.addf %16, %18 : vector<8x64xf32>
    %cst_17 = arith.constant 0.000000e+00 : f32
    %20 = vector.broadcast %cst_17 : f32 to vector<8x64xf32>
    %21 = arith.maximumf %19, %20 : vector<8x64xf32>
    %c0_18 = arith.constant 0 : index
    %c0_19 = arith.constant 0 : index
    %22 = vector.load %arg8[%c0_18, %c0_19] : memref<64x128xf32, #tpu.memory_space<vmem>>, vector<64x128xf32>
    %cst_20 = arith.constant dense<0.000000e+00> : vector<8x128xf32>
    %23 = tpu.matmul %21, %22, %cst_20 {dimension_numbers = #tpu.dot_dimension_numbers<[1], [0], [0], [1], [0, 0, 1, 1], [], []>} : vector<8x64xf32>, vector<64x128xf32>, vector<8x128xf32> -> vector<8x128xf32>
    %c0_21 = arith.constant 0 : index
    %c0_22 = arith.constant 0 : index
    %24 = vector.load %arg9[%c0_21, %c0_22] : memref<1x128xf32, #tpu.memory_space<vmem>>, vector<1x128xf32>
    %25 = vector.broadcast %24 : vector<1x128xf32> to vector<8x128xf32>
    %26 = arith.addf %23, %25 : vector<8x128xf32>
    %27 = arith.negf %26 : vector<8x128xf32>
    %28 = math.exp %27 : vector<8x128xf32>
    %cst_23 = arith.constant 1.000000e+00 : f32
    %29 = vector.broadcast %cst_23 : f32 to vector<8x128xf32>
    %30 = arith.addf %29, %28 : vector<8x128xf32>
    %31 = arith.divf %29, %30 : vector<8x128xf32>
    %c0_24 = arith.constant 0 : index
    %c0_25 = arith.constant 0 : index
    %32 = vector.load %arg10[%c0_24, %c0_25] : memref<8x128xf32, #tpu.memory_space<vmem>>, vector<8x128xf32>
    tpu.vector_store %arg10[%c0_24, %c0_25], %31 {strides = array<i32>} : memref<8x128xf32, #tpu.memory_space<vmem>>, vector<8x128xf32>,
    %c0_26 = arith.constant 0 : index
    %c0_27 = arith.constant 0 : index
    %33 = vector.load %arg11[%c0_26, %c0_27] : memref<8x32xf32, #tpu.memory_space<vmem>>, vector<8x32xf32>
    tpu.vector_store %arg11[%c0_26, %c0_27], %14 {strides = array<i32>} : memref<8x32xf32, #tpu.memory_space<vmem>>, vector<8x32xf32>,
    return
  }
  func.func @transform_0(%arg0: i32) -> (i32, i32) {
    %c0_i32 = arith.constant 0 : i32
    %c0_i32_0 = arith.constant 0 : i32
    return %arg0, %c0_i32 : i32, i32
  }
  func.func @transform_1(%arg0: i32) -> (i32, i32) {
    %c0_i32 = arith.constant 0 : i32
    %c0_i32_0 = arith.constant 0 : i32
    %c0_i32_1 = arith.constant 0 : i32
    return %c0_i32, %c0_i32_0 : i32, i32
  }
  func.func @transform_2(%arg0: i32) -> (i32, i32) {
    %c0_i32 = arith.constant 0 : i32
    %c0_i32_0 = arith.constant 0 : i32
    %c0_i32_1 = arith.constant 0 : i32
    return %c0_i32, %c0_i32_0 : i32, i32
  }
  func.func @transform_3(%arg0: i32) -> (i32, i32) {
    %c0_i32 = arith.constant 0 : i32
    %c0_i32_0 = arith.constant 0 : i32
    %c0_i32_1 = arith.constant 0 : i32
    return %c0_i32, %c0_i32_0 : i32, i32
  }
  func.func @transform_4(%arg0: i32) -> (i32, i32) {
    %c0_i32 = arith.constant 0 : i32
    %c0_i32_0 = arith.constant 0 : i32
    %c0_i32_1 = arith.constant 0 : i32
    return %c0_i32, %c0_i32_0 : i32, i32
  }
  func.func @transform_5(%arg0: i32) -> (i32, i32) {
    %c0_i32 = arith.constant 0 : i32
    %c0_i32_0 = arith.constant 0 : i32
    %c0_i32_1 = arith.constant 0 : i32
    return %c0_i32, %c0_i32_0 : i32, i32
  }
  func.func @transform_6(%arg0: i32) -> (i32, i32) {
    %c0_i32 = arith.constant 0 : i32
    %c0_i32_0 = arith.constant 0 : i32
    %c0_i32_1 = arith.constant 0 : i32
    return %c0_i32, %c0_i32_0 : i32, i32
  }
  func.func @transform_7(%arg0: i32) -> (i32, i32) {
    %c0_i32 = arith.constant 0 : i32
    %c0_i32_0 = arith.constant 0 : i32
    %c0_i32_1 = arith.constant 0 : i32
    return %c0_i32, %c0_i32_0 : i32, i32
  }
  func.func @transform_8(%arg0: i32) -> (i32, i32) {
    %c0_i32 = arith.constant 0 : i32
    %c0_i32_0 = arith.constant 0 : i32
    %c0_i32_1 = arith.constant 0 : i32
    return %c0_i32, %c0_i32_0 : i32, i32
  }
  func.func @transform_9(%arg0: i32) -> (i32, i32) {
    %c0_i32 = arith.constant 0 : i32
    %c0_i32_0 = arith.constant 0 : i32
    return %arg0, %c0_i32 : i32, i32
  }
  func.func @transform_10(%arg0: i32) -> (i32, i32) {
    %c0_i32 = arith.constant 0 : i32
    %c0_i32_0 = arith.constant 0 : i32
    return %arg0, %c0_i32 : i32, i32
  }
}

</mosaic_0001>

<llo_original>
// kernel: tpu_custom_call.1
$region0: #{tpu_custom_call.1}
  #allocation0 [shape = 'u32[]', space=smem, size = 0x4, offset = 0x4, fixed_abs, tag = 'smem constant byte address 0x4 - core index']
  #allocation1 [shape = 'u32[144,128]{1,0:T(1,128)}', space=vmem, size = 0x12000, scoped, tag = 'internal scratch']
  %s0 = inlined_call_operand.vmem [shape: f32[2,128], index: 0, kind: input, shape index: {}]
  %s1 = inlined_call_operand.vmem [shape: f32[128,64], index: 1, kind: input, shape index: {}]
  %s2 = inlined_call_operand.vmem [shape: f32[1,64], index: 2, kind: input, shape index: {}]
  %s3 = inlined_call_operand.vmem [shape: f32[64,32], index: 3, kind: input, shape index: {}]
  %s4 = inlined_call_operand.vmem [shape: f32[1,32], index: 4, kind: input, shape index: {}]
  %s5 = inlined_call_operand.vmem [shape: f32[32,64], index: 5, kind: input, shape index: {}]
  %s6 = inlined_call_operand.vmem [shape: f32[1,64], index: 6, kind: input, shape index: {}]
  %s7 = inlined_call_operand.vmem [shape: f32[64,128], index: 7, kind: input, shape index: {}]
  %s8 = inlined_call_operand.vmem [shape: f32[1,128], index: 8, kind: input, shape index: {}]
  %s9 = inlined_call_operand.hbm [shape: f32[2,128], index: 9, kind: output, shape index: {0}]
  %s10 = inlined_call_operand.hbm [shape: f32[2,32], index: 10, kind: output, shape index: {1}]
  %11 = xla_tuple %s9, %s10
  %s12 = sld [smem:[#allocation0]]
  $region54: #{tpu_custom_call.1} parent=0
    _
  %s14 = ssub.s32 1, %s12
  %s15 = scalar_select 0, %s14, %s12
  $region1: #{tpu_custom_call.1} parent=0
    #allocation2 [shape = 'u8[4096]{0}', space=vmem, size = 0x1000, scoped, tag = 'output window, operand 0, single buffered']
    #allocation3 [shape = 's32[1]{0}', space=sflag, size = 0x4, scoped, tag = 'scoped memory for tpu_custom_call.1']
    #allocation4 [shape = 'u8[4096]{0}', space=vmem, size = 0x1000, scoped, tag = 'output window, operand 1, single buffered']
    #allocation5 [shape = 's32[1]{0}', space=sflag, size = 0x4, scoped, tag = 'scoped memory for tpu_custom_call.1']
    %16 = vsyncpa [#allocation3], 0
    %17 = vsyncpa [#allocation5], 0
    // Predicated region
    $region2: #{tpu_custom_call.1} parent=1 // pred_check
      _
    $region3: #{tpu_custom_call.1} parent=1 // pred_check_branch
      %19 = sbr.rel (0) target = $region5
    $region4: #{tpu_custom_call.1} parent=1 // pred_region
      _
    $region5: #{tpu_custom_call.1} parent=1 // pred_fallthru
      _
    // Predicated region
    $region6: #{tpu_custom_call.1} parent=1 // pred_check
      _
    $region7: #{tpu_custom_call.1} parent=1 // pred_check_branch
      %21 = sbr.rel (0) target = $region9
    $region8: #{tpu_custom_call.1} parent=1 // pred_region
      _
    $region9: #{tpu_custom_call.1} parent=1 // pred_fallthru
      _
    // Predicated region
    $region10: #{tpu_custom_call.1} parent=1 // pred_check
      _
    $region11: #{tpu_custom_call.1} parent=1 // pred_check_branch
      %23 = sbr.rel (0) target = $region13
    $region12: #{tpu_custom_call.1} parent=1 // pred_region
      _
    $region13: #{tpu_custom_call.1} parent=1 // pred_fallthru
      _
    // Predicated region
    $region14: #{tpu_custom_call.1} parent=1 // pred_check
      _
    $region15: #{tpu_custom_call.1} parent=1 // pred_check_branch
      %25 = sbr.rel (0) target = $region17
    $region16: #{tpu_custom_call.1} parent=1 // pred_region
      _
    $region17: #{tpu_custom_call.1} parent=1 // pred_fallthru
      _
    // Predicated region
    $region18: #{tpu_custom_call.1} parent=1 // pred_check
      _
    $region19: #{tpu_custom_call.1} parent=1 // pred_check_branch
      %27 = sbr.rel (0) target = $region21
    $region20: #{tpu_custom_call.1} parent=1 // pred_region
      _
    $region21: #{tpu_custom_call.1} parent=1 // pred_fallthru
      _
    // Predicated region
    $region22: #{tpu_custom_call.1} parent=1 // pred_check
      _
    $region23: #{tpu_custom_call.1} parent=1 // pred_check_branch
      %29 = sbr.rel (0) target = $region25
    $region24: #{tpu_custom_call.1} parent=1 // pred_region
      _
    $region25: #{tpu_custom_call.1} parent=1 // pred_fallthru
      _
    // Predicated region
    $region26: #{tpu_custom_call.1} parent=1 // pred_check
      _
    $region27: #{tpu_custom_call.1} parent=1 // pred_check_branch
      %31 = sbr.rel (0) target = $region29
    $region28: #{tpu_custom_call.1} parent=1 // pred_region
      _
    $region29: #{tpu_custom_call.1} parent=1 // pred_fallthru
      _
    // Predicated region
    $region30: #{tpu_custom_call.1} parent=1 // pred_check
      _
    $region31: #{tpu_custom_call.1} parent=1 // pred_check_branch
      %33 = sbr.rel (0) target = $region33
    $region32: #{tpu_custom_call.1} parent=1 // pred_region
      _
    $region33: #{tpu_custom_call.1} parent=1 // pred_fallthru
      _
    // Predicated region
    $region34: #{tpu_custom_call.1} parent=1 // pred_check
      _
    $region35: #{tpu_custom_call.1} parent=1 // pred_check_branch
      %35 = sbr.rel (0) target = $region37
    $region36: #{tpu_custom_call.1} parent=1 // pred_region
      _
    $region37: #{tpu_custom_call.1} parent=1 // pred_fallthru
      _
    %v36 = vld [vmem:[%s0] sm:$0xff]
    %v37 = vld [vmem:[%s1] sm:$0xff]
    %v38 = vld [vmem:[%s1 + $0x8] sm:$0xff]
    %v39 = vld [vmem:[%s1 + $0x10] sm:$0xff]
    %v40 = vld [vmem:[%s1 + $0x18] sm:$0xff]
    %v41 = vld [vmem:[%s1 + $0x20] sm:$0xff]
    %v42 = vld [vmem:[%s1 + $0x28] sm:$0xff]
    %v43 = vld [vmem:[%s1 + $0x30] sm:$0xff]
    %v44 = vld [vmem:[%s1 + $0x38] sm:$0xff]
    %v45 = vld [vmem:[%s1 + $0x40] sm:$0xff]
    %v46 = vld [vmem:[%s1 + $0x48] sm:$0xff]
    %v47 = vld [vmem:[%s1 + $0x50] sm:$0xff]
    %v48 = vld [vmem:[%s1 + $0x58] sm:$0xff]
    %v49 = vld [vmem:[%s1 + $0x60] sm:$0xff]
    %v50 = vld [vmem:[%s1 + $0x68] sm:$0xff]
    %v51 = vld [vmem:[%s1 + $0x70] sm:$0xff]
    %v52 = vld [vmem:[%s1 + $0x78] sm:$0xff]
    %v53 = vld [vmem:[%s2] sm:$0x1]
    %v55 = vlaneseq
    %v56 = vshrl.u32 %v55, 7
    %v57 = vsub.s32 0, %v56
    %v58 = vrot.slane %v53, %v57
    %60 = vmatprep.subr.mxu0 0.0
    %61 = vmatpush1.msra.mxu0 %v52
    %62 = vmatprep.subr.mxu0 0.0
    %63 = vmatpush1.msra.mxu0 %v51
    %64 = vmatprep.subr.mxu0 0.0
    %65 = vmatpush1.msra.mxu0 %v50
    %66 = vmatprep.subr.mxu0 0.0
    %67 = vmatpush1.msra.mxu0 %v49
    %68 = vmatprep.subr.mxu0 0.0
    %69 = vmatpush1.msra.mxu0 %v48
    %70 = vmatprep.subr.mxu0 0.0
    %71 = vmatpush1.msra.mxu0 %v47
    %72 = vmatprep.subr.mxu0 0.0
    %73 = vmatpush1.msra.mxu0 %v46
    %74 = vmatprep.subr.mxu0 0.0
    %75 = vmatpush1.msra.mxu0 %v45
    %76 = vmatprep.subr.mxu0 0.0
    %77 = vmatpush1.msra.mxu0 %v44
    %78 = vmatprep.subr.mxu0 0.0
    %79 = vmatpush1.msra.mxu0 %v43
    %80 = vmatprep.subr.mxu0 0.0
    %81 = vmatpush1.msra.mxu0 %v42
    %82 = vmatprep.subr.mxu0 0.0
    %83 = vmatpush1.msra.mxu0 %v41
    %84 = vmatprep.subr.mxu0 0.0
    %85 = vmatpush1.msra.mxu0 %v40
    %86 = vmatprep.subr.mxu0 0.0
    %87 = vmatpush1.msra.mxu0 %v39
    %88 = vmatprep.subr.mxu0 0.0
    %89 = vmatpush1.msra.mxu0 %v38
    %90 = vmatprep.subr.mxu0 0.0
    %91 = vmatpush1.msra.mxu0 %v37
    %92 = vmatprep.subr.mxu0 0.0
    %93 = vmatpush2.msra.mxu0 0.0
    %94 = vmatprep.subr.mxu0 0.0
    %95 = vmatpush2.msra.mxu0 0.0
    %96 = vmatprep.subr.mxu0 0.0
    %97 = vmatpush2.msra.mxu0 0.0
    %98 = vmatprep.subr.mxu0 0.0
    %99 = vmatpush2.msra.mxu0 0.0
    %100 = vmatprep.subr.mxu0 0.0
    %101 = vmatpush2.msra.mxu0 0.0
    %102 = vmatprep.subr.mxu0 0.0
    %103 = vmatpush2.msra.mxu0 0.0
    %104 = vmatprep.subr.mxu0 0.0
    %105 = vmatpush2.msra.mxu0 0.0
    %106 = vmatprep.subr.mxu0 0.0
    %107 = vmatpush2.msra.mxu0 0.0
    %108 = vmatprep.subr.mxu0 0.0
    %109 = vmatpush2.msra.mxu0 0.0
    %110 = vmatprep.subr.mxu0 0.0
    %111 = vmatpush2.msra.mxu0 0.0
    %112 = vmatprep.subr.mxu0 0.0
    %113 = vmatpush2.msra.mxu0 0.0
    %114 = vmatprep.subr.mxu0 0.0
    %115 = vmatpush2.msra.mxu0 0.0
    %116 = vmatprep.subr.mxu0 0.0
    %117 = vmatpush2.msra.mxu0 0.0
    %118 = vmatprep.subr.mxu0 0.0
    %119 = vmatpush2.msra.mxu0 0.0
    %120 = vmatprep.subr.mxu0 0.0
    %121 = vmatpush2.msra.mxu0 0.0
    %122 = vmatprep.subr.mxu0 0.0
    %123 = vmatpush2.msra.mxu0 0.0
    %124 = vmatprep.mubr.f32.mxu0 0.0
    %125 = vmatmul.mubr.f32.gmra.mxu0 %v36
    %v126 = vpop.f32.mrf.mxu0
    %v127 = vadd.f32 %v58, %v126
    %v128 = vpop.f32.mrf.mxu0
    %129 = vdwg.mxu0
    %v130 = vmax.f32 %v127, 0.0
    %v131 = vld [vmem:[%s3] sm:$0xff]
    %v132 = vld [vmem:[%s3 + $0x8] sm:$0xff]
    %v133 = vld [vmem:[%s3 + $0x10] sm:$0xff]
    %v134 = vld [vmem:[%s3 + $0x18] sm:$0xff]
    %v135 = vld [vmem:[%s3 + $0x20] sm:$0xff]
    %v136 = vld [vmem:[%s3 + $0x28] sm:$0xff]
    %v137 = vld [vmem:[%s3 + $0x30] sm:$0xff]
    %v138 = vld [vmem:[%s3 + $0x38] sm:$0xff]
    %v139 = vld [vmem:[%s4] sm:$0x1]
    %v141 = vlaneseq
    %v142 = vshrl.u32 %v141, 7
    %v143 = vsub.s32 0, %v142
    %v144 = vrot.slane %v139, %v143
    %vm146 = vcmask 523264
    %v148 = vsel %vm146, %v130, 0
    %150 = vmatprep.subr.mxu0 0.0
    %151 = vmatpush1.msra.mxu0 0.0
    %152 = vmatprep.subr.mxu0 0.0
    %153 = vmatpush1.msra.mxu0 0.0
    %154 = vmatprep.subr.mxu0 0.0
    %155 = vmatpush1.msra.mxu0 0.0
    %156 = vmatprep.subr.mxu0 0.0
    %157 = vmatpush1.msra.mxu0 0.0
    %158 = vmatprep.subr.mxu0 0.0
    %159 = vmatpush1.msra.mxu0 0.0
    %160 = vmatprep.subr.mxu0 0.0
    %161 = vmatpush1.msra.mxu0 0.0
    %162 = vmatprep.subr.mxu0 0.0
    %163 = vmatpush1.msra.mxu0 0.0
    %164 = vmatprep.subr.mxu0 0.0
    %165 = vmatpush1.msra.mxu0 0.0
    %166 = vmatprep.subr.mxu0 0.0
    %167 = vmatpush1.msra.mxu0 %v138
    %168 = vmatprep.subr.mxu0 0.0
    %169 = vmatpush1.msra.mxu0 %v137
    %170 = vmatprep.subr.mxu0 0.0
    %171 = vmatpush1.msra.mxu0 %v136
    %172 = vmatprep.subr.mxu0 0.0
    %173 = vmatpush1.msra.mxu0 %v135
    %174 = vmatprep.subr.mxu0 0.0
    %175 = vmatpush1.msra.mxu0 %v134
    %176 = vmatprep.subr.mxu0 0.0
    %177 = vmatpush1.msra.mxu0 %v133
    %178 = vmatprep.subr.mxu0 0.0
    %179 = vmatpush1.msra.mxu0 %v132
    %180 = vmatprep.subr.mxu0 0.0
    %181 = vmatpush1.msra.mxu0 %v131
    %182 = vmatprep.subr.mxu0 0.0
    %183 = vmatpush2.msra.mxu0 0.0
    %184 = vmatprep.subr.mxu0 0.0
    %185 = vmatpush2.msra.mxu0 0.0
    %186 = vmatprep.subr.mxu0 0.0
    %187 = vmatpush2.msra.mxu0 0.0
    %188 = vmatprep.subr.mxu0 0.0
    %189 = vmatpush2.msra.mxu0 0.0
    %190 = vmatprep.subr.mxu0 0.0
    %191 = vmatpush2.msra.mxu0 0.0
    %192 = vmatprep.subr.mxu0 0.0
    %193 = vmatpush2.msra.mxu0 0.0
    %194 = vmatprep.subr.mxu0 0.0
    %195 = vmatpush2.msra.mxu0 0.0
    %196 = vmatprep.subr.mxu0 0.0
    %197 = vmatpush2.msra.mxu0 0.0
    %198 = vmatprep.subr.mxu0 0.0
    %199 = vmatpush2.msra.mxu0 0.0
    %200 = vmatprep.subr.mxu0 0.0
    %201 = vmatpush2.msra.mxu0 0.0
    %202 = vmatprep.subr.mxu0 0.0
    %203 = vmatpush2.msra.mxu0 0.0
    %204 = vmatprep.subr.mxu0 0.0
    %205 = vmatpush2.msra.mxu0 0.0
    %206 = vmatprep.subr.mxu0 0.0
    %207 = vmatpush2.msra.mxu0 0.0
    %208 = vmatprep.subr.mxu0 0.0
    %209 = vmatpush2.msra.mxu0 0.0
    %210 = vmatprep.subr.mxu0 0.0
    %211 = vmatpush2.msra.mxu0 0.0
    %212 = vmatprep.subr.mxu0 0.0
    %213 = vmatpush2.msra.mxu0 0.0
    %214 = vmatprep.mubr.f32.mxu0 0.0
    %215 = vmatmul.mubr.f32.gmra.mxu0 %v148
    %v216 = vpop.f32.mrf.mxu0
    %v217 = vadd.f32 %v144, %v216
    %v218 = vpop.f32.mrf.mxu0
    %219 = vdwg.mxu0
    %v220 = vmax.f32 %v217, 0.0
    %v221 = vld [vmem:[%s5] sm:$0xff]
    %v222 = vld [vmem:[%s5 + $0x8] sm:$0xff]
    %v223 = vld [vmem:[%s5 + $0x10] sm:$0xff]
    %v224 = vld [vmem:[%s5 + $0x18] sm:$0xff]
    %v225 = vld [vmem:[%s6] sm:$0x1]
    %v227 = vlaneseq
    %v228 = vshrl.u32 %v227, 7
    %v229 = vsub.s32 0, %v228
    %v230 = vrot.slane %v225, %v229
    %vm232 = vcmask 261120
    %v234 = vsel %vm232, %v220, 0
    %236 = vmatprep.subr.mxu0 0.0
    %237 = vmatpush1.msra.mxu0 0.0
    %238 = vmatprep.subr.mxu0 0.0
    %239 = vmatpush1.msra.mxu0 0.0
    %240 = vmatprep.subr.mxu0 0.0
    %241 = vmatpush1.msra.mxu0 0.0
    %242 = vmatprep.subr.mxu0 0.0
    %243 = vmatpush1.msra.mxu0 0.0
    %244 = vmatprep.subr.mxu0 0.0
    %245 = vmatpush1.msra.mxu0 0.0
    %246 = vmatprep.subr.mxu0 0.0
    %247 = vmatpush1.msra.mxu0 0.0
    %248 = vmatprep.subr.mxu0 0.0
    %249 = vmatpush1.msra.mxu0 0.0
    %250 = vmatprep.subr.mxu0 0.0
    %251 = vmatpush1.msra.mxu0 0.0
    %252 = vmatprep.subr.mxu0 0.0
    %253 = vmatpush1.msra.mxu0 0.0
    %254 = vmatprep.subr.mxu0 0.0
    %255 = vmatpush1.msra.mxu0 0.0
    %256 = vmatprep.subr.mxu0 0.0
    %257 = vmatpush1.msra.mxu0 0.0
    %258 = vmatprep.subr.mxu0 0.0
    %259 = vmatpush1.msra.mxu0 0.0
    %260 = vmatprep.subr.mxu0 0.0
    %261 = vmatpush1.msra.mxu0 %v224
    %262 = vmatprep.subr.mxu0 0.0
    %263 = vmatpush1.msra.mxu0 %v223
    %264 = vmatprep.subr.mxu0 0.0
    %265 = vmatpush1.msra.mxu0 %v222
    %266 = vmatprep.subr.mxu0 0.0
    %267 = vmatpush1.msra.mxu0 %v221
    %268 = vmatprep.subr.mxu0 0.0
    %269 = vmatpush2.msra.mxu0 0.0
    %270 = vmatprep.subr.mxu0 0.0
    %271 = vmatpush2.msra.mxu0 0.0
    %272 = vmatprep.subr.mxu0 0.0
    %273 = vmatpush2.msra.mxu0 0.0
    %274 = vmatprep.subr.mxu0 0.0
    %275 = vmatpush2.msra.mxu0 0.0
    %276 = vmatprep.subr.mxu0 0.0
    %277 = vmatpush2.msra.mxu0 0.0
    %278 = vmatprep.subr.mxu0 0.0
    %279 = vmatpush2.msra.mxu0 0.0
    %280 = vmatprep.subr.mxu0 0.0
    %281 = vmatpush2.msra.mxu0 0.0
    %282 = vmatprep.subr.mxu0 0.0
    %283 = vmatpush2.msra.mxu0 0.0
    %284 = vmatprep.subr.mxu0 0.0
    %285 = vmatpush2.msra.mxu0 0.0
    %286 = vmatprep.subr.mxu0 0.0
    %287 = vmatpush2.msra.mxu0 0.0
    %288 = vmatprep.subr.mxu0 0.0
    %289 = vmatpush2.msra.mxu0 0.0
    %290 = vmatprep.subr.mxu0 0.0
    %291 = vmatpush2.msra.mxu0 0.0
    %292 = vmatprep.subr.mxu0 0.0
    %293 = vmatpush2.msra.mxu0 0.0
    %294 = vmatprep.subr.mxu0 0.0
    %295 = vmatpush2.msra.mxu0 0.0
    %296 = vmatprep.subr.mxu0 0.0
    %297 = vmatpush2.msra.mxu0 0.0
    %298 = vmatprep.subr.mxu0 0.0
    %299 = vmatpush2.msra.mxu0 0.0
    %300 = vmatprep.mubr.f32.mxu0 0.0
    %301 = vmatmul.mubr.f32.gmra.mxu0 %v234
    %v302 = vpop.f32.mrf.mxu0
    %v303 = vadd.f32 %v230, %v302
    %v304 = vpop.f32.mrf.mxu0
    %305 = vdwg.mxu0
    %v306 = vmax.f32 %v303, 0.0
    %v307 = vld [vmem:[%s7] sm:$0xff]
    %v308 = vld [vmem:[%s7 + $0x8] sm:$0xff]
    %v309 = vld [vmem:[%s7 + $0x10] sm:$0xff]
    %v310 = vld [vmem:[%s7 + $0x18] sm:$0xff]
    %v311 = vld [vmem:[%s7 + $0x20] sm:$0xff]
    %v312 = vld [vmem:[%s7 + $0x28] sm:$0xff]
    %v313 = vld [vmem:[%s7 + $0x30] sm:$0xff]
    %v314 = vld [vmem:[%s7 + $0x38] sm:$0xff]
    %v315 = vld [vmem:[%s8] sm:$0x1]
    %v317 = vlaneseq
    %v318 = vshrl.u32 %v317, 7
    %v319 = vsub.s32 0, %v318
    %v320 = vrot.slane %v315, %v319
    %v323 = vsel %vm146, %v306, 0
    %325 = vmatprep.subr.mxu0 0.0
    %326 = vmatpush1.msra.mxu0 0.0
    %327 = vmatprep.subr.mxu0 0.0
    %328 = vmatpush1.msra.mxu0 0.0
    %329 = vmatprep.subr.mxu0 0.0
    %330 = vmatpush1.msra.mxu0 0.0
    %331 = vmatprep.subr.mxu0 0.0
    %332 = vmatpush1.msra.mxu0 0.0
    %333 = vmatprep.subr.mxu0 0.0
    %334 = vmatpush1.msra.mxu0 0.0
    %335 = vmatprep.subr.mxu0 0.0
    %336 = vmatpush1.msra.mxu0 0.0
    %337 = vmatprep.subr.mxu0 0.0
    %338 = vmatpush1.msra.mxu0 0.0
    %339 = vmatprep.subr.mxu0 0.0
    %340 = vmatpush1.msra.mxu0 0.0
    %341 = vmatprep.subr.mxu0 0.0
    %342 = vmatpush1.msra.mxu0 %v314
    %343 = vmatprep.subr.mxu0 0.0
    %344 = vmatpush1.msra.mxu0 %v313
    %345 = vmatprep.subr.mxu0 0.0
    %346 = vmatpush1.msra.mxu0 %v312
    %347 = vmatprep.subr.mxu0 0.0
    %348 = vmatpush1.msra.mxu0 %v311
    %349 = vmatprep.subr.mxu0 0.0
    %350 = vmatpush1.msra.mxu0 %v310
    %351 = vmatprep.subr.mxu0 0.0
    %352 = vmatpush1.msra.mxu0 %v309
    %353 = vmatprep.subr.mxu0 0.0
    %354 = vmatpush1.msra.mxu0 %v308
    %355 = vmatprep.subr.mxu0 0.0
    %356 = vmatpush1.msra.mxu0 %v307
    %357 = vmatprep.subr.mxu0 0.0
    %358 = vmatpush2.msra.mxu0 0.0
    %359 = vmatprep.subr.mxu0 0.0
    %360 = vmatpush2.msra.mxu0 0.0
    %361 = vmatprep.subr.mxu0 0.0
    %362 = vmatpush2.msra.mxu0 0.0
    %363 = vmatprep.subr.mxu0 0.0
    %364 = vmatpush2.msra.mxu0 0.0
    %365 = vmatprep.subr.mxu0 0.0
    %366 = vmatpush2.msra.mxu0 0.0
    %367 = vmatprep.subr.mxu0 0.0
    %368 = vmatpush2.msra.mxu0 0.0
    %369 = vmatprep.subr.mxu0 0.0
    %370 = vmatpush2.msra.mxu0 0.0
    %371 = vmatprep.subr.mxu0 0.0
    %372 = vmatpush2.msra.mxu0 0.0
    %373 = vmatprep.subr.mxu0 0.0
    %374 = vmatpush2.msra.mxu0 0.0
    %375 = vmatprep.subr.mxu0 0.0
    %376 = vmatpush2.msra.mxu0 0.0
    %377 = vmatprep.subr.mxu0 0.0
    %378 = vmatpush2.msra.mxu0 0.0
    %379 = vmatprep.subr.mxu0 0.0
    %380 = vmatpush2.msra.mxu0 0.0
    %381 = vmatprep.subr.mxu0 0.0
    %382 = vmatpush2.msra.mxu0 0.0
    %383 = vmatprep.subr.mxu0 0.0
    %384 = vmatpush2.msra.mxu0 0.0
    %385 = vmatprep.subr.mxu0 0.0
    %386 = vmatpush2.msra.mxu0 0.0
    %387 = vmatprep.subr.mxu0 0.0
    %388 = vmatpush2.msra.mxu0 0.0
    %389 = vmatprep.mubr.f32.mxu0 0.0
    %390 = vmatmul.mubr.f32.gmra.mxu0 %v323
    %v391 = vpop.f32.mrf.mxu0
    %v392 = vadd.f32 %v320, %v391
    %v393 = vpop.f32.mrf.mxu0
    %394 = vdwg.mxu0
    %v395 = vxor.u32 %v392, 2147483648
    %v396 = vmul.f32 %v395, 1.442695
    %v397 = vpow.pop %v396
    %v398 = vadd.f32 %v397, 1.0
    %v399 = vrcp.pop %v398
    %v400 = vmul.f32 1.0, %v399
    %401 = vst [vmem:[#allocation2] sm:$0xff] %v400
    %402 = vst.msk [vmem:[#allocation4] sm:$0xff] %vm232, %v220
    // Predicated region
    $region38: #{tpu_custom_call.1} parent=1 // pred_check
      _
    $region39: #{tpu_custom_call.1} parent=1 // pred_check_branch
      %404 = sbr.rel (0) target = $region41
    $region40: #{tpu_custom_call.1} parent=1 // pred_region
      %s406 = ssub.s32 128, 32
      %407 = vsyncadd [#allocation3], %s406
      %s408 = sshll.u32 [#allocation2], 4
      %s409 = int_to_ptr.vmem [resolvable:$true] %s408
      %414 = dma.vmem_to_hbm [thread:$0]  %s409, 32, %s9, [#allocation3], 32, 32, 2
    $region41: #{tpu_custom_call.1} parent=1 // pred_fallthru
      _
    // Predicated region
    $region42: #{tpu_custom_call.1} parent=1 // pred_check
      _
    $region43: #{tpu_custom_call.1} parent=1 // pred_check_branch
      %416 = sbr.rel (0) target = $region45
    $region44: #{tpu_custom_call.1} parent=1 // pred_region
      %s418 = ssub.s32 128, 32
      %419 = vsyncadd [#allocation5], %s418
      %s420 = sshll.u32 [#allocation4], 4
      %s421 = int_to_ptr.vmem [resolvable:$true] %s420
      %426 = dma.vmem_to_hbm [thread:$0]  %s421, 32, %s10, [#allocation5], 32, 32, 2
    $region45: #{tpu_custom_call.1} parent=1 // pred_fallthru
      _
    // Predicated region
    $region46: #{tpu_custom_call.1} parent=1 // pred_check
      _
    $region47: #{tpu_custom_call.1} parent=1 // pred_check_branch
      %428 = sbr.rel (0) target = $region49
    $region48: #{tpu_custom_call.1} parent=1 // pred_region
      %429 = dma.done [#allocation3], 128
    $region49: #{tpu_custom_call.1} parent=1 // pred_fallthru
      _
    // Predicated region
    $region50: #{tpu_custom_call.1} parent=1 // pred_check
      _
    $region51: #{tpu_custom_call.1} parent=1 // pred_check_branch
      %431 = sbr.rel (0) target = $region53
    $region52: #{tpu_custom_call.1} parent=1 // pred_region
      %432 = dma.done [#allocation5], 128
    $region53: #{tpu_custom_call.1} parent=1 // pred_fallthru
      _
    %433 = vsyncpa [#allocation3], 1
    %434 = vsyncpa [#allocation5], 1

</llo_original>
